<compile_context>
chip_gen: v7x
topology: tpu7x:2x2x1
jax: 0.10.0
libtpu: 0.0.40
codegen_flags: <defaults>
</compile_context>

<pallas_src>
import jax
import jax.numpy as jnp
from jax import lax
from jax.experimental import pallas as pl
from jax.experimental.pallas import tpu as pltpu


_SQRT_HALF = 0.7071067811865476


def _gelu_exact_f32(x):
    # PyTorch nn.GELU() default: exact erf-based GELU (computed in f32).
    return 0.5 * x * (1.0 + lax.erf(x * _SQRT_HALF))


def mlp_kernel(x_ref, w1_ref, b1_ref, w2_ref, b2_ref, o_ref, acc_ref):
    # Grid = (token tiles, hidden tiles).  The hidden axis is the fc2 reduction
    # axis, placed last and marked "arbitrary"; the output block is constant
    # across it, so acc_ref accumulates partial fc2 products.
    k = pl.program_id(1)
    nk = pl.num_programs(1)

    @pl.when(k == 0)
    def _():
        # Seed the accumulator with the fc2 bias: saves a zero-fill plus one
        # tm*D_out f32 add in the finalize branch.
        acc_ref[...] = jnp.broadcast_to(
            b2_ref[...].astype(jnp.float32), acc_ref.shape)

    # fc1 on this hidden slice: native-dtype MXU operands, f32 accumulation.
    h = jnp.dot(x_ref[...], w1_ref[...], preferred_element_type=jnp.float32)
    h = _gelu_exact_f32(h + b1_ref[...].astype(jnp.float32))
    # dropout(p=0.0) is the identity; nothing to do.

    # fc2 partial product: cast h to the weight dtype so the MXU runs at native
    # (e.g. bf16) rate; accumulate in the f32 scratch.
    acc_ref[...] += jnp.dot(h.astype(w2_ref.dtype), w2_ref[...],
                            preferred_element_type=jnp.float32)

    @pl.when(k == nk - 1)
    def _():
        o_ref[...] = acc_ref[...].astype(o_ref.dtype)


def _round_up(n, m):
    return ((n + m - 1) // m) * m


def _vmem_budget_bytes():
    """Per-generation usable VMEM budget (and physical capacity)."""
    cap = None
    try:
        cap = getattr(pltpu.get_tpu_info(), "vmem_capacity_bytes", None)
    except Exception:
        cap = None
    if cap is None:
        cap = 64 << 20                      # unknown: assume v7x-like 64 MiB/TC
    if cap >= (100 << 20):                  # v5e / v6e: 128 MiB per TensorCore
        return 100 << 20, cap
    return 48 << 20, cap                    # v7x: leave headroom under 64 MiB


def _block_vmem_bytes(tm, th, d_in, d_out, itm):
    # Double-buffered pipeline blocks + f32 accumulator + f32 GELU intermediate
    # + its native-dtype cast copy.
    blocks = tm * d_in + d_in * th + th + th * d_out + d_out + tm * d_out
    return 2 * blocks * itm + tm * d_out * 4 + tm * th * (4 + itm)


def _select_tiles(M, d_in, d_hid, d_out, itm, budget):
    m8 = _round_up(max(M, 1), 8)
    tm_cands = sorted({min(t, m8) for t in (512, 384, 256, 128, 64, 32, 16, 8)},
                      reverse=True)
    th_stream = [t for t in (512, 384, 256, 128) if t < d_hid and d_hid % t == 0]

    # Phase 1: weights fully VMEM-resident (single reduction step -> W1/W2 are
    # DMA'd from HBM exactly once for the whole kernel).  Keep tm >= 128 so the
    # MXU isn't starved just to buy residency.
    for tm in tm_cands:
        if tm < min(128, m8):
            break
        if _block_vmem_bytes(tm, d_hid, d_in, d_out, itm) <= budget:
            return tm, d_hid

    # Phase 2: stream the hidden dim; shrink th before tm so arithmetic
    # intensity (set by tm) stays as high as possible.
    for tm in tm_cands:
        for th in th_stream:
            if _block_vmem_bytes(tm, th, d_in, d_out, itm) <= budget:
                return tm, th

    # Fallback (e.g. huge, non-128-divisible hidden dim): best effort.
    # TODO(synk): pad D_hid (zero weight columns/rows, zero bias) to a multiple
    # of 128 in the wrapper so it can always be streamed in 128-aligned slices.
    tm = tm_cands[-1]
    th = th_stream[-1] if th_stream else d_hid
    return tm, th


def mlp_pallas(x, w1, b1, w2, b2, *, interpret=False):
    """Fused Mlp: GELU(x @ w1 + b1) @ w2 + b2  (dropout p=0 == identity).

    x:  (M, D_in)       flattened (batch*seq) tokens
    w1: (D_in, D_hid)   fc1 weight, transposed from PyTorch (out, in)
    b1: (D_hid,)
    w2: (D_hid, D_out)  fc2 weight, transposed
    b2: (D_out,)
    """
    M, D_in = x.shape
    D_hid = w1.shape[1]
    D_out = w2.shape[1]
    itm = x.dtype.itemsize
    # TODO(synk): if a config ever has D_out < 128, pad it here to keep output
    # stores lane-dense (current configs use D_out >= 128).

    budget, vmem_cap = _vmem_budget_bytes()
    tm, th = _select_tiles(M, D_in, D_hid, D_out, itm, budget)
    assert D_hid % th == 0, "hidden tile must divide hidden_features"

    # v7x megacore: if the "parallel" token axis would only hold one MXU-sized
    # tile, split it so both TensorCores get work (no-op on v5e/v6e).
    if pl.cdiv(M, tm) == 1 and tm >= 256:
        tm = _round_up(tm // 2, 8)

    num_i = pl.cdiv(M, tm)      # ragged tail handled by Pallas masked stores
    nk = D_hid // th

    b1_2d = b1.reshape(1, D_hid)
    b2_2d = b2.reshape(1, D_out)

    # Cost estimate: weights are read once if resident (nk == 1), else once per
    # token tile (index maps depend only on k, so the k-inner loop re-streams
    # them for every new i).
    weight_reads = 1 if nk == 1 else int(num_i)
    flops = 2 * M * D_in * D_hid + 2 * M * D_hid * D_out
    bytes_accessed = (x.size * itm
                      + weight_reads * (w1.size * w1.dtype.itemsize
                                        + w2.size * w2.dtype.itemsize)
                      + b1.size * b1.dtype.itemsize
                      + b2.size * b2.dtype.itemsize
                      + M * D_out * itm)
    cost = pl.CostEstimate(flops=int(flops),
                           transcendentals=int(M * D_hid),
                           bytes_accessed=int(bytes_accessed))

    vmem_est = _block_vmem_bytes(tm, th, D_in, D_out, itm)
    vmem_limit = int(min(max(vmem_est + (16 << 20), 32 << 20),
                         budget + (8 << 20), vmem_cap))

    # NOTE: the tiny bias blocks could use pipeline_mode=pl.Buffered(1) to skip
    # a redundant second buffer; omitted for portability (few-KiB saving).
    out = pl.pallas_call(
        mlp_kernel,
        out_shape=jax.ShapeDtypeStruct((M, D_out), x.dtype),
        grid_spec=pltpu.PrefetchScalarGridSpec(
            num_scalar_prefetch=0,
            grid=(num_i, nk),
            in_specs=[
                # x tile is constant across the hidden axis -> stays resident.
                pl.BlockSpec((tm, D_in), lambda i, k: (i, 0)),
                # Weight blocks depend only on k: fully resident when nk == 1.
                pl.BlockSpec((D_in, th), lambda i, k: (0, k)),
                pl.BlockSpec((1, th), lambda i, k: (0, k)),
                pl.BlockSpec((th, D_out), lambda i, k: (k, 0)),
                pl.BlockSpec((1, D_out), lambda i, k: (0, 0)),
            ],
            # Same output block across the reduction axis -> accumulator pattern.
            out_specs=pl.BlockSpec((tm, D_out), lambda i, k: (i, 0)),
            scratch_shapes=[pltpu.VMEM((tm, D_out), jnp.float32)],
        ),
        compiler_params=pltpu.CompilerParams(
            dimension_semantics=("parallel", "arbitrary"),
            vmem_limit_bytes=vmem_limit),
        cost_estimate=cost,
        interpret=interpret,
    )(x, w1, b1_2d, w2, b2_2d)

    return out


def mlp_reference(x, w1, b1, w2, b2):
    h = x.astype(jnp.float32) @ w1.astype(jnp.float32) + b1.astype(jnp.float32)
    h = 0.5 * h * (1.0 + lax.erf(h * _SQRT_HALF))
    y = h @ w2.astype(jnp.float32) + b2.astype(jnp.float32)
    return y.astype(x.dtype)


if __name__ == "__main__":
    # Small shapes consistent with the module: tokens = batch * seq.
    B, S = 2, 8
    in_features = 128
    hidden_features = 256
    out_features = 128  # out_features defaults to in_features

    key = jax.random.PRNGKey(0)
    kx, k1, k2, k3, k4 = jax.random.split(key, 5)

    x = jax.random.normal(kx, (B, S, in_features), dtype=jnp.float32)

    # Deterministic params (PyTorch fc weight is (out, in); we store transposed).
    w1 = jax.random.normal(k1, (in_features, hidden_features), jnp.float32) * 0.02
    b1 = jax.random.normal(k2, (hidden_features,), jnp.float32) * 0.02
    w2 = jax.random.normal(k3, (hidden_features, out_features), jnp.float32) * 0.02
    b2 = jax.random.normal(k4, (out_features,), jnp.float32) * 0.02

    x2d = x.reshape(B * S, in_features)
    out = mlp_pallas(x2d, w1, b1, w2, b2)
    out = jax.block_until_ready(out)

    ref = mlp_reference(x2d, w1, b1, w2, b2)
    assert out.shape == (B * S, out_features)
    assert jnp.allclose(out, ref, atol=1e-4, rtol=1e-4), \
        float(jnp.max(jnp.abs(out - ref)))

    out3d = out.reshape(B, S, out_features)  # restore (B, S, D) view
    jax.block_until_ready(out3d)
    print("KERNEL_OK")
</pallas_src>

<mosaic_0001>
module attributes {stable_mosaic.version = 11 : i64} {
  func.func @mlp_kernel(%arg0: i32, %arg1: i32, %arg2: memref<16x128xf32, #tpu.memory_space<vmem>>, %arg3: memref<128x256xf32, #tpu.memory_space<vmem>>, %arg4: memref<1x256xf32, #tpu.memory_space<vmem>>, %arg5: memref<256x128xf32, #tpu.memory_space<vmem>>, %arg6: memref<1x128xf32, #tpu.memory_space<vmem>>, %arg7: memref<16x128xf32, #tpu.memory_space<vmem>>, %arg8: memref<16x128xf32, #tpu.memory_space<vmem>>) attributes {dimension_semantics = [#tpu.dimension_semantics<parallel>, #tpu.dimension_semantics<arbitrary>], iteration_bounds = array<i64: 1, 1>, scalar_prefetch = 0 : i64, scratch_operands = 1 : i64, tpu.core_type = #tpu.core_type<tc>, window_params = [{transform_indices = @transform_0, window_bounds = array<i64: 16, 128>}, {transform_indices = @transform_1, window_bounds = array<i64: 128, 256>}, {transform_indices = @transform_2, window_bounds = array<i64: 1, 256>}, {transform_indices = @transform_3, window_bounds = array<i64: 256, 128>}, {pipeline_mode = #tpu.pipeline_mode<synchronous>, transform_indices = @transform_4, window_bounds = array<i64: 1, 128>}, {transform_indices = @transform_5, window_bounds = array<i64: 16, 128>}]} {
    %c0_i32 = arith.constant 0 : i32
    %0 = arith.cmpi eq, %arg1, %c0_i32 : i32
    %1 = arith.extui %0 : i1 to i32
    %c0_i32_0 = arith.constant 0 : i32
    %2 = arith.cmpi ne, %1, %c0_i32_0 : i32
    scf.if %2 {
      %c0_18 = arith.constant 0 : index
      %c0_19 = arith.constant 0 : index
      %25 = vector.load %arg6[%c0_18, %c0_19] : memref<1x128xf32, #tpu.memory_space<vmem>>, vector<1x128xf32>
      %26 = vector.shape_cast %25 : vector<1x128xf32> to vector<1x128xf32>
      %27 = vector.broadcast %26 : vector<1x128xf32> to vector<16x128xf32>
      %c0_20 = arith.constant 0 : index
      %c0_21 = arith.constant 0 : index
      %28 = vector.load %arg8[%c0_20, %c0_21] : memref<16x128xf32, #tpu.memory_space<vmem>>, vector<16x128xf32>
      tpu.vector_store %arg8[%c0_20, %c0_21], %27 {strides = array<i32>} : memref<16x128xf32, #tpu.memory_space<vmem>>, vector<16x128xf32>,
    } else {
    }
    %c0 = arith.constant 0 : index
    %c0_1 = arith.constant 0 : index
    %3 = vector.load %arg2[%c0, %c0_1] : memref<16x128xf32, #tpu.memory_space<vmem>>, vector<16x128xf32>
    %c0_2 = arith.constant 0 : index
    %c0_3 = arith.constant 0 : index
    %4 = vector.load %arg3[%c0_2, %c0_3] : memref<128x256xf32, #tpu.memory_space<vmem>>, vector<128x256xf32>
    %cst = arith.constant dense<0.000000e+00> : vector<16x256xf32>
    %5 = tpu.matmul %3, %4, %cst {dimension_numbers = #tpu.dot_dimension_numbers<[1], [0], [0], [1], [0, 0, 1, 1], [], []>} : vector<16x128xf32>, vector<128x256xf32>, vector<16x256xf32> -> vector<16x256xf32>
    %c0_4 = arith.constant 0 : index
    %c0_5 = arith.constant 0 : index
    %6 = vector.load %arg4[%c0_4, %c0_5] : memref<1x256xf32, #tpu.memory_space<vmem>>, vector<1x256xf32>
    %7 = vector.broadcast %6 : vector<1x256xf32> to vector<16x256xf32>
    %8 = arith.addf %5, %7 : vector<16x256xf32>
    %cst_6 = arith.constant 5.000000e-01 : f32
    %9 = vector.broadcast %cst_6 : f32 to vector<16x256xf32>
    %10 = arith.mulf %9, %8 : vector<16x256xf32>
    %cst_7 = arith.constant 0.707106769 : f32
    %11 = vector.broadcast %cst_7 : f32 to vector<16x256xf32>
    %12 = arith.mulf %8, %11 : vector<16x256xf32>
    %13 = math.erf %12 : vector<16x256xf32>
    %cst_8 = arith.constant 1.000000e+00 : f32
    %14 = vector.broadcast %cst_8 : f32 to vector<16x256xf32>
    %15 = arith.addf %14, %13 : vector<16x256xf32>
    %16 = arith.mulf %10, %15 : vector<16x256xf32>
    %c0_9 = arith.constant 0 : index
    %c0_10 = arith.constant 0 : index
    %17 = vector.load %arg8[%c0_9, %c0_10] : memref<16x128xf32, #tpu.memory_space<vmem>>, vector<16x128xf32>
    %c0_11 = arith.constant 0 : index
    %c0_12 = arith.constant 0 : index
    %18 = vector.load %arg5[%c0_11, %c0_12] : memref<256x128xf32, #tpu.memory_space<vmem>>, vector<256x128xf32>
    %cst_13 = arith.constant dense<0.000000e+00> : vector<16x128xf32>
    %19 = tpu.matmul %16, %18, %cst_13 {dimension_numbers = #tpu.dot_dimension_numbers<[1], [0], [0], [1], [0, 0, 1, 1], [], []>} : vector<16x256xf32>, vector<256x128xf32>, vector<16x128xf32> -> vector<16x128xf32>
    %20 = arith.addf %17, %19 : vector<16x128xf32>
    %c0_14 = arith.constant 0 : index
    %c0_15 = arith.constant 0 : index
    %21 = vector.load %arg8[%c0_14, %c0_15] : memref<16x128xf32, #tpu.memory_space<vmem>>, vector<16x128xf32>
    tpu.vector_store %arg8[%c0_14, %c0_15], %20 {strides = array<i32>} : memref<16x128xf32, #tpu.memory_space<vmem>>, vector<16x128xf32>,
    %c0_i32_16 = arith.constant 0 : i32
    %22 = arith.cmpi eq, %arg1, %c0_i32_16 : i32
    %23 = arith.extui %22 : i1 to i32
    %c0_i32_17 = arith.constant 0 : i32
    %24 = arith.cmpi ne, %23, %c0_i32_17 : i32
    scf.if %24 {
      %c0_18 = arith.constant 0 : index
      %c0_19 = arith.constant 0 : index
      %25 = vector.load %arg8[%c0_18, %c0_19] : memref<16x128xf32, #tpu.memory_space<vmem>>, vector<16x128xf32>
      %c0_20 = arith.constant 0 : index
      %c0_21 = arith.constant 0 : index
      %26 = vector.load %arg7[%c0_20, %c0_21] : memref<16x128xf32, #tpu.memory_space<vmem>>, vector<16x128xf32>
      tpu.vector_store %arg7[%c0_20, %c0_21], %25 {strides = array<i32>} : memref<16x128xf32, #tpu.memory_space<vmem>>, vector<16x128xf32>,
    } else {
    }
    return
  }
  func.func @transform_0(%arg0: i32, %arg1: i32) -> (i32, i32) {
    %c0_i32 = arith.constant 0 : i32
    %c0_i32_0 = arith.constant 0 : i32
    return %arg0, %c0_i32 : i32, i32
  }
  func.func @transform_1(%arg0: i32, %arg1: i32) -> (i32, i32) {
    %c0_i32 = arith.constant 0 : i32
    %c0_i32_0 = arith.constant 0 : i32
    return %c0_i32, %arg1 : i32, i32
  }
  func.func @transform_2(%arg0: i32, %arg1: i32) -> (i32, i32) {
    %c0_i32 = arith.constant 0 : i32
    %c0_i32_0 = arith.constant 0 : i32
    return %c0_i32, %arg1 : i32, i32
  }
  func.func @transform_3(%arg0: i32, %arg1: i32) -> (i32, i32) {
    %c0_i32 = arith.constant 0 : i32
    %c0_i32_0 = arith.constant 0 : i32
    return %arg1, %c0_i32 : i32, i32
  }
  func.func @transform_4(%arg0: i32, %arg1: i32) -> (i32, i32) {
    %c0_i32 = arith.constant 0 : i32
    %c0_i32_0 = arith.constant 0 : i32
    %c0_i32_1 = arith.constant 0 : i32
    return %c0_i32, %c0_i32_0 : i32, i32
  }
  func.func @transform_5(%arg0: i32, %arg1: i32) -> (i32, i32) {
    %c0_i32 = arith.constant 0 : i32
    %c0_i32_0 = arith.constant 0 : i32
    return %arg0, %c0_i32 : i32, i32
  }
}

</mosaic_0001>

<llo_original>
// kernel: tpu_custom_call.1
$region0: #{tpu_custom_call.1}
  #allocation0 [shape = 'u32[]', space=smem, size = 0x4, offset = 0x4, fixed_abs, tag = 'smem constant byte address 0x4 - core index']
  #allocation1 [shape = 'u32[144,128]{1,0:T(1,128)}', space=vmem, size = 0x12000, scoped, tag = 'internal scratch']
  #allocation2 [shape = 'f32[16,128]{1,0:T(8,128)}', space=vmem, size = 0x2000, scoped, tag = 'scratch operand']
  %s0 = inlined_call_operand.hbm [shape: f32[16,128], index: 0, kind: input, shape index: {}]
  %s1 = inlined_call_operand.hbm [shape: f32[128,256], index: 1, kind: input, shape index: {}]
  %s2 = inlined_call_operand.vmem [shape: f32[1,256], index: 2, kind: input, shape index: {}]
  %s3 = inlined_call_operand.hbm [shape: f32[256,128], index: 3, kind: input, shape index: {}]
  %s4 = inlined_call_operand.vmem [shape: f32[1,128], index: 4, kind: input, shape index: {}]
  %s5 = inlined_call_operand.hbm [shape: f32[16,128], index: 5, kind: output, shape index: {}]
  %s6 = sld [smem:[#allocation0]]
  $region50: #{tpu_custom_call.1} parent=0
    _
  %s8 = ssub.s32 1, %s6
  %s9 = scalar_select 0, %s8, %s6
  $region1: #{tpu_custom_call.1} parent=0
    #allocation3 [shape = 'u8[8192]{0}', space=vmem, size = 0x2000, scoped, tag = 'input window, operand 0, single buffered']
    #allocation4 [shape = 's32[1]{0}', space=sflag, size = 0x4, scoped, tag = 'scoped memory for tpu_custom_call.1']
    #allocation5 [shape = 's32[1]{0}', space=sflag, size = 0x4, scoped, tag = 'scoped memory for tpu_custom_call.1']
    #allocation6 [shape = 'u8[131072]{0}', space=vmem, size = 0x20000, scoped, tag = 'input window, operand 1, single buffered']
    #allocation7 [shape = 's32[1]{0}', space=sflag, size = 0x4, scoped, tag = 'scoped memory for tpu_custom_call.1']
    #allocation8 [shape = 'u8[131072]{0}', space=vmem, size = 0x20000, scoped, tag = 'input window, operand 3, single buffered']
    #allocation9 [shape = 'u8[8192]{0}', space=vmem, size = 0x2000, scoped, tag = 'output window, operand 0, single buffered']
    %10 = vsyncpa [#allocation4], 0
    %11 = vsyncpa [#allocation7], 0
    %12 = vsyncpa [#allocation5], 0
    // Predicated region
    $region2: #{tpu_custom_call.1} parent=1 // pred_check
      _
    $region3: #{tpu_custom_call.1} parent=1 // pred_check_branch
      %14 = sbr.rel (0) target = $region5
    $region4: #{tpu_custom_call.1} parent=1 // pred_region
      %s16 = ssub.s32 256, 256
      %17 = vsyncadd [#allocation4], %s16
      %s18 = sshll.u32 [#allocation3], 4
      %s19 = int_to_ptr.vmem [resolvable:$true] %s18
      %24 = dma.hbm_to_vmem [thread:$0]  %s0, 256, %s19, [#allocation4], 128, 128, 8
    $region5: #{tpu_custom_call.1} parent=1 // pred_fallthru
      _
    // Predicated region
    $region6: #{tpu_custom_call.1} parent=1 // pred_check
      _
    $region7: #{tpu_custom_call.1} parent=1 // pred_check_branch
      %26 = sbr.rel (0) target = $region9
    $region8: #{tpu_custom_call.1} parent=1 // pred_region
      %s28 = ssub.s32 4096, 4096
      %29 = vsyncadd [#allocation7], %s28
      %s30 = sshll.u32 [#allocation6], 4
      %s31 = int_to_ptr.vmem [resolvable:$true] %s30
      %36 = dma.hbm_to_vmem [thread:$0]  %s1, 4096, %s31, [#allocation7], 256, 256, 16
    $region9: #{tpu_custom_call.1} parent=1 // pred_fallthru
      _
    // Predicated region
    $region10: #{tpu_custom_call.1} parent=1 // pred_check
      _
    $region11: #{tpu_custom_call.1} parent=1 // pred_check_branch
      %38 = sbr.rel (0) target = $region13
    $region12: #{tpu_custom_call.1} parent=1 // pred_region
      _
    $region13: #{tpu_custom_call.1} parent=1 // pred_fallthru
      _
    // Predicated region
    $region14: #{tpu_custom_call.1} parent=1 // pred_check
      _
    $region15: #{tpu_custom_call.1} parent=1 // pred_check_branch
      %40 = sbr.rel (0) target = $region17
    $region16: #{tpu_custom_call.1} parent=1 // pred_region
      %s42 = ssub.s32 4096, 4096
      %43 = vsyncadd [#allocation7], %s42
      %s44 = sshll.u32 [#allocation8], 4
      %s45 = int_to_ptr.vmem [resolvable:$true] %s44
      %50 = dma.hbm_to_vmem [thread:$0]  %s3, 4096, %s45, [#allocation7], 128, 128, 8
    $region17: #{tpu_custom_call.1} parent=1 // pred_fallthru
      _
    // Predicated region
    $region18: #{tpu_custom_call.1} parent=1 // pred_check
      _
    $region19: #{tpu_custom_call.1} parent=1 // pred_check_branch
      %52 = sbr.rel (0) target = $region21
    $region20: #{tpu_custom_call.1} parent=1 // pred_region
      _
    $region21: #{tpu_custom_call.1} parent=1 // pred_fallthru
      _
    // Predicated region
    $region22: #{tpu_custom_call.1} parent=1 // pred_check
      _
    $region23: #{tpu_custom_call.1} parent=1 // pred_check_branch
      %54 = sbr.rel (0) target = $region25
    $region24: #{tpu_custom_call.1} parent=1 // pred_region
      %55 = dma.done [#allocation4], 256
    $region25: #{tpu_custom_call.1} parent=1 // pred_fallthru
      _
    // Predicated region
    $region26: #{tpu_custom_call.1} parent=1 // pred_check
      _
    $region27: #{tpu_custom_call.1} parent=1 // pred_check_branch
      %57 = sbr.rel (0) target = $region29
    $region28: #{tpu_custom_call.1} parent=1 // pred_region
      %58 = dma.done [#allocation7], 4096
    $region29: #{tpu_custom_call.1} parent=1 // pred_fallthru
      _
    // Predicated region
    $region30: #{tpu_custom_call.1} parent=1 // pred_check
      _
    $region31: #{tpu_custom_call.1} parent=1 // pred_check_branch
      %60 = sbr.rel (0) target = $region33
    $region32: #{tpu_custom_call.1} parent=1 // pred_region
      %61 = dma.done [#allocation7], 4096
    $region33: #{tpu_custom_call.1} parent=1 // pred_fallthru
      _
    %p62 = scmp.eq.s32.totalorder 0, 0
    // Predicated region
    $region34: #{tpu_custom_call.1} parent=1 // pred_check
      %p63 = pneg %p62
    $region35: #{tpu_custom_call.1} parent=1 // pred_check_branch
      %65 = sbr.rel (%p63) target = $region37
    $region36: #{tpu_custom_call.1} parent=1 // pred_region
      %v66 = vld [vmem:[%s4] sm:$0x1]
      %v68 = vlaneseq
      %v69 = vshrl.u32 %v68, 7
      %v70 = vsub.s32 0, %v69
      %v71 = vrot.slane %v66, %v70
      %73 = vst [vmem:[#allocation2] sm:$0xff] %v71
      %74 = vst [vmem:[#allocation2 + $0x8] sm:$0xff] %v71
    $region37: #{tpu_custom_call.1} parent=1 // pred_fallthru
      _
    %v75 = vld [vmem:[#allocation3] sm:$0xff]
    %v76 = vld [vmem:[#allocation3 + $0x8] sm:$0xff]
    %v77 = vld [vmem:[#allocation6] sm:$0xff]
    %v78 = vld [vmem:[#allocation6 + $0x8] sm:$0xff]
    %v79 = vld [vmem:[#allocation6 + $0x10] sm:$0xff]
    %v80 = vld [vmem:[#allocation6 + $0x18] sm:$0xff]
    %v81 = vld [vmem:[#allocation6 + $0x20] sm:$0xff]
    %v82 = vld [vmem:[#allocation6 + $0x28] sm:$0xff]
    %v83 = vld [vmem:[#allocation6 + $0x30] sm:$0xff]
    %v84 = vld [vmem:[#allocation6 + $0x38] sm:$0xff]
    %v85 = vld [vmem:[#allocation6 + $0x40] sm:$0xff]
    %v86 = vld [vmem:[#allocation6 + $0x48] sm:$0xff]
    %v87 = vld [vmem:[#allocation6 + $0x50] sm:$0xff]
    %v88 = vld [vmem:[#allocation6 + $0x58] sm:$0xff]
    %v89 = vld [vmem:[#allocation6 + $0x60] sm:$0xff]
    %v90 = vld [vmem:[#allocation6 + $0x68] sm:$0xff]
    %v91 = vld [vmem:[#allocation6 + $0x70] sm:$0xff]
    %v92 = vld [vmem:[#allocation6 + $0x78] sm:$0xff]
    %v93 = vld [vmem:[#allocation6 + $0x80] sm:$0xff]
    %v94 = vld [vmem:[#allocation6 + $0x88] sm:$0xff]
    %v95 = vld [vmem:[#allocation6 + $0x90] sm:$0xff]
    %v96 = vld [vmem:[#allocation6 + $0x98] sm:$0xff]
    %v97 = vld [vmem:[#allocation6 + $0xa0] sm:$0xff]
    %v98 = vld [vmem:[#allocation6 + $0xa8] sm:$0xff]
    %v99 = vld [vmem:[#allocation6 + $0xb0] sm:$0xff]
    %v100 = vld [vmem:[#allocation6 + $0xb8] sm:$0xff]
    %v101 = vld [vmem:[#allocation6 + $0xc0] sm:$0xff]
    %v102 = vld [vmem:[#allocation6 + $0xc8] sm:$0xff]
    %v103 = vld [vmem:[#allocation6 + $0xd0] sm:$0xff]
    %v104 = vld [vmem:[#allocation6 + $0xd8] sm:$0xff]
    %v105 = vld [vmem:[#allocation6 + $0xe0] sm:$0xff]
    %v106 = vld [vmem:[#allocation6 + $0xe8] sm:$0xff]
    %v107 = vld [vmem:[#allocation6 + $0xf0] sm:$0xff]
    %v108 = vld [vmem:[#allocation6 + $0xf8] sm:$0xff]
    %v109 = vld [vmem:[%s2] sm:$0x3]
    %v111 = vlaneseq
    %v112 = vshrl.u32 %v111, 7
    %v113 = vsub.s32 0, %v112
    %v114 = vrot.slane %v109, %v113
    %v115 = vlaneseq
    %v116 = vshrl.u32 %v115, 7
    %v117 = vsub.s32 1, %v116
    %v118 = vrot.slane %v109, %v117
    %121 = vmatprep.subr.mxu0 %v78
    %122 = vmatpush1.msra.mxu0 %v77
    %123 = vmatprep.subr.mxu0 %v80
    %124 = vmatpush1.msra.mxu0 %v79
    %125 = vmatprep.subr.mxu0 %v82
    %126 = vmatpush1.msra.mxu0 %v81
    %127 = vmatprep.subr.mxu0 %v84
    %128 = vmatpush1.msra.mxu0 %v83
    %129 = vmatprep.subr.mxu0 %v86
    %130 = vmatpush1.msra.mxu0 %v85
    %131 = vmatprep.subr.mxu0 %v88
    %132 = vmatpush1.msra.mxu0 %v87
    %133 = vmatprep.subr.mxu0 %v90
    %134 = vmatpush1.msra.mxu0 %v89
    %135 = vmatprep.subr.mxu0 %v92
    %136 = vmatpush1.msra.mxu0 %v91
    %137 = vmatprep.subr.mxu0 %v94
    %138 = vmatpush1.msra.mxu0 %v93
    %139 = vmatprep.subr.mxu0 %v96
    %140 = vmatpush1.msra.mxu0 %v95
    %141 = vmatprep.subr.mxu0 %v98
    %142 = vmatpush1.msra.mxu0 %v97
    %143 = vmatprep.subr.mxu0 %v100
    %144 = vmatpush1.msra.mxu0 %v99
    %145 = vmatprep.subr.mxu0 %v102
    %146 = vmatpush1.msra.mxu0 %v101
    %147 = vmatprep.subr.mxu0 %v104
    %148 = vmatpush1.msra.mxu0 %v103
    %149 = vmatprep.subr.mxu0 %v106
    %150 = vmatpush1.msra.mxu0 %v105
    %151 = vmatprep.subr.mxu0 %v108
    %152 = vmatpush1.msra.mxu0 %v107
    %153 = vmatprep.subr.mxu0 0.0
    %154 = vmatpush1.msra.mxu0 0.0
    %155 = vmatprep.subr.mxu0 0.0
    %156 = vmatpush1.msra.mxu0 0.0
    %157 = vmatprep.subr.mxu0 0.0
    %158 = vmatpush1.msra.mxu0 0.0
    %159 = vmatprep.subr.mxu0 0.0
    %160 = vmatpush1.msra.mxu0 0.0
    %161 = vmatprep.subr.mxu0 0.0
    %162 = vmatpush1.msra.mxu0 0.0
    %163 = vmatprep.subr.mxu0 0.0
    %164 = vmatpush1.msra.mxu0 0.0
    %165 = vmatprep.subr.mxu0 0.0
    %166 = vmatpush1.msra.mxu0 0.0
    %167 = vmatprep.subr.mxu0 0.0
    %168 = vmatpush1.msra.mxu0 0.0
    %169 = vmatprep.subr.mxu0 0.0
    %170 = vmatpush1.msra.mxu0 0.0
    %171 = vmatprep.subr.mxu0 0.0
    %172 = vmatpush1.msra.mxu0 0.0
    %173 = vmatprep.subr.mxu0 0.0
    %174 = vmatpush1.msra.mxu0 0.0
    %175 = vmatprep.subr.mxu0 0.0
    %176 = vmatpush1.msra.mxu0 0.0
    %177 = vmatprep.subr.mxu0 0.0
    %178 = vmatpush1.msra.mxu0 0.0
    %179 = vmatprep.subr.mxu0 0.0
    %180 = vmatpush1.msra.mxu0 0.0
    %181 = vmatprep.subr.mxu0 0.0
    %182 = vmatpush1.msra.mxu0 0.0
    %183 = vmatprep.subr.mxu0 0.0
    %184 = vmatpush1.msra.mxu0 0.0
    %185 = vmatprep.mubr.f32.mxu0 0.0
    %186 = vmatmul.mubr.f32.gmra.mrb[0].mxu0 %v75
    %v187 = vpop.f32.mrb[0].mxu0
    %v188 = vadd.f32 %v114, %v187
    %v189 = vpop.f32.mrb[0].mxu0
    %v190 = vadd.f32 %v118, %v189
    %191 = vmatprep.mubr.f32.mxu0 0.0
    %192 = vmatmul.mubr.f32.gmra.mrb[0].mxu0 %v76
    %v193 = vpop.f32.mrb[0].mxu0
    %v194 = vadd.f32 %v114, %v193
    %v195 = vpop.f32.mrb[0].mxu0
    %v196 = vadd.f32 %v118, %v195
    %197 = vdwg.mxu0
    %v198 = vmul.f32 %v188, 0.5
    %v199 = vmul.f32 %v190, 0.5
    %v200 = vmul.f32 %v194, 0.5
    %v201 = vmul.f32 %v196, 0.5
    %v202 = vmul.f32 %v188, 0.70710677
    %v203 = vmul.f32 %v190, 0.70710677
    %v204 = vmul.f32 %v194, 0.70710677
    %v205 = vmul.f32 %v196, 0.70710677
    %v206 = verf.f32.pop %v202
    %v207 = verf.f32.pop %v203
    %v208 = verf.f32.pop %v204
    %v209 = verf.f32.pop %v205
    %v210 = vadd.f32 %v206, 1.0
    %v211 = vadd.f32 %v207, 1.0
    %v212 = vadd.f32 %v208, 1.0
    %v213 = vadd.f32 %v209, 1.0
    %v214 = vmul.f32 %v198, %v210
    %v215 = vmul.f32 %v199, %v211
    %v216 = vmul.f32 %v200, %v212
    %v217 = vmul.f32 %v201, %v213
    %v218 = vld [vmem:[#allocation2] sm:$0xff]
    %v219 = vld [vmem:[#allocation2 + $0x8] sm:$0xff]
    %v220 = vld [vmem:[#allocation8] sm:$0xff]
    %v221 = vld [vmem:[#allocation8 + $0x8] sm:$0xff]
    %v222 = vld [vmem:[#allocation8 + $0x10] sm:$0xff]
    %v223 = vld [vmem:[#allocation8 + $0x18] sm:$0xff]
    %v224 = vld [vmem:[#allocation8 + $0x20] sm:$0xff]
    %v225 = vld [vmem:[#allocation8 + $0x28] sm:$0xff]
    %v226 = vld [vmem:[#allocation8 + $0x30] sm:$0xff]
    %v227 = vld [vmem:[#allocation8 + $0x38] sm:$0xff]
    %v228 = vld [vmem:[#allocation8 + $0x40] sm:$0xff]
    %v229 = vld [vmem:[#allocation8 + $0x48] sm:$0xff]
    %v230 = vld [vmem:[#allocation8 + $0x50] sm:$0xff]
    %v231 = vld [vmem:[#allocation8 + $0x58] sm:$0xff]
    %v232 = vld [vmem:[#allocation8 + $0x60] sm:$0xff]
    %v233 = vld [vmem:[#allocation8 + $0x68] sm:$0xff]
    %v234 = vld [vmem:[#allocation8 + $0x70] sm:$0xff]
    %v235 = vld [vmem:[#allocation8 + $0x78] sm:$0xff]
    %v236 = vld [vmem:[#allocation8 + $0x80] sm:$0xff]
    %v237 = vld [vmem:[#allocation8 + $0x88] sm:$0xff]
    %v238 = vld [vmem:[#allocation8 + $0x90] sm:$0xff]
    %v239 = vld [vmem:[#allocation8 + $0x98] sm:$0xff]
    %v240 = vld [vmem:[#allocation8 + $0xa0] sm:$0xff]
    %v241 = vld [vmem:[#allocation8 + $0xa8] sm:$0xff]
    %v242 = vld [vmem:[#allocation8 + $0xb0] sm:$0xff]
    %v243 = vld [vmem:[#allocation8 + $0xb8] sm:$0xff]
    %v244 = vld [vmem:[#allocation8 + $0xc0] sm:$0xff]
    %v245 = vld [vmem:[#allocation8 + $0xc8] sm:$0xff]
    %v246 = vld [vmem:[#allocation8 + $0xd0] sm:$0xff]
    %v247 = vld [vmem:[#allocation8 + $0xd8] sm:$0xff]
    %v248 = vld [vmem:[#allocation8 + $0xe0] sm:$0xff]
    %v249 = vld [vmem:[#allocation8 + $0xe8] sm:$0xff]
    %v250 = vld [vmem:[#allocation8 + $0xf0] sm:$0xff]
    %v251 = vld [vmem:[#allocation8 + $0xf8] sm:$0xff]
    %252 = vmatprep.subr.mxu0 0.0
    %253 = vmatpush1.msra.mxu0 %v220
    %254 = vmatprep.subr.mxu0 0.0
    %255 = vmatpush1.msra.mxu0 %v221
    %256 = vmatprep.subr.mxu0 0.0
    %257 = vmatpush1.msra.mxu0 %v222
    %258 = vmatprep.subr.mxu0 0.0
    %259 = vmatpush1.msra.mxu0 %v223
    %260 = vmatprep.subr.mxu0 0.0
    %261 = vmatpush1.msra.mxu0 %v224
    %262 = vmatprep.subr.mxu0 0.0
    %263 = vmatpush1.msra.mxu0 %v225
    %264 = vmatprep.subr.mxu0 0.0
    %265 = vmatpush1.msra.mxu0 %v226
    %266 = vmatprep.subr.mxu0 0.0
    %267 = vmatpush1.msra.mxu0 %v227
    %268 = vmatprep.subr.mxu0 0.0
    %269 = vmatpush1.msra.mxu0 %v228
    %270 = vmatprep.subr.mxu0 0.0
    %271 = vmatpush1.msra.mxu0 %v229
    %272 = vmatprep.subr.mxu0 0.0
    %273 = vmatpush1.msra.mxu0 %v230
    %274 = vmatprep.subr.mxu0 0.0
    %275 = vmatpush1.msra.mxu0 %v231
    %276 = vmatprep.subr.mxu0 0.0
    %277 = vmatpush1.msra.mxu0 %v232
    %278 = vmatprep.subr.mxu0 0.0
    %279 = vmatpush1.msra.mxu0 %v233
    %280 = vmatprep.subr.mxu0 0.0
    %281 = vmatpush1.msra.mxu0 %v234
    %282 = vmatprep.subr.mxu0 0.0
    %283 = vmatpush1.msra.mxu0 %v235
    %284 = vmatprep.subr.mxu0 0.0
    %285 = vmatpush1.msra.mxu0 %v236
    %286 = vmatprep.subr.mxu0 0.0
    %287 = vmatpush1.msra.mxu0 %v237
    %288 = vmatprep.subr.mxu0 0.0
    %289 = vmatpush1.msra.mxu0 %v238
    %290 = vmatprep.subr.mxu0 0.0
    %291 = vmatpush1.msra.mxu0 %v239
    %292 = vmatprep.subr.mxu0 0.0
    %293 = vmatpush1.msra.mxu0 %v240
    %294 = vmatprep.subr.mxu0 0.0
    %295 = vmatpush1.msra.mxu0 %v241
    %296 = vmatprep.subr.mxu0 0.0
    %297 = vmatpush1.msra.mxu0 %v242
    %298 = vmatprep.subr.mxu0 0.0
    %299 = vmatpush1.msra.mxu0 %v243
    %300 = vmatprep.subr.mxu0 0.0
    %301 = vmatpush1.msra.mxu0 %v244
    %302 = vmatprep.subr.mxu0 0.0
    %303 = vmatpush1.msra.mxu0 %v245
    %304 = vmatprep.subr.mxu0 0.0
    %305 = vmatpush1.msra.mxu0 %v246
    %306 = vmatprep.subr.mxu0 0.0
    %307 = vmatpush1.msra.mxu0 %v247
    %308 = vmatprep.subr.mxu0 0.0
    %309 = vmatpush1.msra.mxu0 %v248
    %310 = vmatprep.subr.mxu0 0.0
    %311 = vmatpush1.msra.mxu0 %v249
    %312 = vmatprep.subr.mxu0 0.0
    %313 = vmatpush1.msra.mxu0 %v250
    %314 = vmatprep.subr.mxu0 0.0
    %315 = vmatpush1.msra.mxu0 %v251
    %316 = vmatprep.mubr.f32.mxu0 %v215
    %317 = vmatmul.mubr.f32.gmra.mrb[0].mxu0 %v214
    %v318 = vpop.f32.mrb[0].mxu0
    %v319 = vadd.f32 0.0, %v318
    %v320 = vpop.f32.mrb[0].mxu0
    %321 = vmatprep.mubr.f32.mxu0 %v217
    %322 = vmatmul.mubr.f32.gmra.mrb[0].mxu0 %v216
    %v323 = vpop.f32.mrb[0].mxu0
    %v324 = vadd.f32 0.0, %v323
    %v325 = vpop.f32.mrb[0].mxu0
    %326 = vdwg.mxu0
    %v327 = vadd.f32 %v218, %v319
    %v328 = vadd.f32 %v219, %v324
    %329 = vst [vmem:[#allocation2] sm:$0xff] %v327
    %330 = vst [vmem:[#allocation2 + $0x8] sm:$0xff] %v328
    // Predicated region
    $region38: #{tpu_custom_call.1} parent=1 // pred_check
      %p331 = pneg %p62
    $region39: #{tpu_custom_call.1} parent=1 // pred_check_branch
      %333 = sbr.rel (%p331) target = $region41
    $region40: #{tpu_custom_call.1} parent=1 // pred_region
      %v334 = vld [vmem:[#allocation2] sm:$0xff]
      %v335 = vld [vmem:[#allocation2 + $0x8] sm:$0xff]
      %336 = vst [vmem:[#allocation9] sm:$0xff] %v334
      %337 = vst [vmem:[#allocation9 + $0x8] sm:$0xff] %v335
    $region41: #{tpu_custom_call.1} parent=1 // pred_fallthru
      _
    // Predicated region
    $region42: #{tpu_custom_call.1} parent=1 // pred_check
      _
    $region43: #{tpu_custom_call.1} parent=1 // pred_check_branch
      %339 = sbr.rel (0) target = $region45
    $region44: #{tpu_custom_call.1} parent=1 // pred_region
      %s341 = ssub.s32 256, 256
      %342 = vsyncadd [#allocation5], %s341
      %s343 = sshll.u32 [#allocation9], 4
      %s344 = int_to_ptr.vmem [resolvable:$true] %s343
      %349 = dma.vmem_to_hbm [thread:$0]  %s344, 256, %s5, [#allocation5], 128, 128, 8
    $region45: #{tpu_custom_call.1} parent=1 // pred_fallthru
      _
    // Predicated region
    $region46: #{tpu_custom_call.1} parent=1 // pred_check
      _
    $region47: #{tpu_custom_call.1} parent=1 // pred_check_branch
      %351 = sbr.rel (0) target = $region49
    $region48: #{tpu_custom_call.1} parent=1 // pred_region
      %352 = dma.done [#allocation5], 256
    $region49: #{tpu_custom_call.1} parent=1 // pred_fallthru
      _
    %353 = vsyncpa [#allocation4], 1
    %354 = vsyncpa [#allocation7], 1
    %355 = vsyncpa [#allocation5], 1

</llo_original>
